<compile_context>
chip_gen: v7x
topology: tpu7x:2x2x1
jax: 0.10.0
libtpu: 0.0.40
codegen_flags: <defaults>
</compile_context>

<pallas_src>
import jax
import jax.numpy as jnp
from jax.experimental import pallas as pl
from jax.experimental.pallas import tpu as pltpu


def _round_up(x, m):
    return ((x + m - 1) // m) * m


def _ffn_kernel(x_ref, w1_ref, b1_ref, w2_ref, b2_ref, o_ref, acc_ref):
    f = pl.program_id(1)

    @pl.when(f == 0)
    def _():
        acc_ref[...] = jnp.zeros_like(acc_ref)

    # First matmul in native dtype on the MXU, f32 accumulation.
    h = jnp.dot(x_ref[...], w1_ref[...], preferred_element_type=jnp.float32)
    # Bias + ReLU on the f32 accumulator (VPU).
    h = jnp.maximum(h + b1_ref[...].astype(jnp.float32), 0.0)
    # (Dropout: identity in eval mode.)

    # Second matmul: accumulate this hidden-dim tile's contribution.
    acc_ref[...] += jnp.dot(h.astype(w2_ref.dtype), w2_ref[...],
                            preferred_element_type=jnp.float32)

    @pl.when(f == pl.num_programs(1) - 1)
    def _():
        o_ref[...] = (acc_ref[...] + b2_ref[...].astype(jnp.float32)).astype(o_ref.dtype)


def positionwise_feed_forward(x, w1, b1, w2, b2, *, tm=512, tf=1024):
    """x: (batch, seq, dim_embed) -> (batch, seq, dim_embed).

    Computes relu(x @ w1 + b1) @ w2 + b2 position-wise (dropout = identity).
    """
    B, S, E = x.shape
    F = w1.shape[1]
    M = B * S

    # --- Row tiling: clamp to problem size, keep sublane (8) alignment, pad M.
    tm = min(tm, _round_up(M, 8))
    tm = _round_up(tm, 8)
    M_pad = _round_up(M, tm)

    # --- Hidden-dim tiling: clamp to F, keep lane (128) alignment, pad F.
    if tf >= F:
        tf = F
        F_pad = F
    else:
        tf = _round_up(tf, 128)
        F_pad = _round_up(F, tf)
        if tf >= F_pad:       # padding collapsed it to a single tile
            tf = F_pad

    x2d = x.reshape(M, E)
    if M_pad != M:
        x2d = jnp.pad(x2d, ((0, M_pad - M), (0, 0)))
    if F_pad != F:
        # Zero-padded hidden units contribute relu(0 + 0) @ 0 == 0: exact.
        w1 = jnp.pad(w1, ((0, 0), (0, F_pad - F)))
        b1 = jnp.pad(b1, ((0, F_pad - F),))
        w2 = jnp.pad(w2, ((0, F_pad - F), (0, 0)))

    b1_2d = b1.reshape(1, F_pad)
    b2_2d = b2.reshape(1, E)

    grid = (M_pad // tm, F_pad // tf)

    out2d = pl.pallas_call(
        _ffn_kernel,
        out_shape=jax.ShapeDtypeStruct((M_pad, E), x.dtype),
        grid_spec=pltpu.PrefetchScalarGridSpec(
            num_scalar_prefetch=0,
            grid=grid,
            in_specs=[
                pl.BlockSpec((tm, E), lambda i, f: (i, 0)),   # x rows (resident over f)
                pl.BlockSpec((E, tf), lambda i, f: (0, f)),   # W1 hidden-dim tile
                pl.BlockSpec((1, tf), lambda i, f: (0, f)),   # b1 hidden-dim tile
                pl.BlockSpec((tf, E), lambda i, f: (f, 0)),   # W2 hidden-dim tile
                pl.BlockSpec((1, E), lambda i, f: (0, 0)),    # b2 (full)
            ],
            out_specs=pl.BlockSpec((tm, E), lambda i, f: (i, 0)),
            scratch_shapes=[pltpu.VMEM((tm, E), jnp.float32)],  # f32 accumulator
        ),
        compiler_params=pltpu.CompilerParams(
            dimension_semantics=("parallel", "arbitrary"),
            vmem_limit_bytes=64 * 1024 * 1024,
        ),
    )(x2d, w1, b1_2d, w2, b2_2d)

    if M_pad != M:
        out2d = out2d[:M]
    return out2d.reshape(B, S, E)


def _init_params(key, dim_embed, dim_pffn, dtype=jnp.float32):
    # Deterministic PyTorch-style init: U(-1/sqrt(fan_in), 1/sqrt(fan_in)).
    k1, k2, k3, k4 = jax.random.split(key, 4)
    bound1 = 1.0 / (dim_embed ** 0.5)
    bound2 = 1.0 / (dim_pffn ** 0.5)
    w1 = jax.random.uniform(k1, (dim_embed, dim_pffn), dtype, -bound1, bound1)
    b1 = jax.random.uniform(k2, (dim_pffn,), dtype, -bound1, bound1)
    w2 = jax.random.uniform(k3, (dim_pffn, dim_embed), dtype, -bound2, bound2)
    b2 = jax.random.uniform(k4, (dim_embed,), dtype, -bound2, bound2)
    return w1, b1, w2, b2


def _reference(x, w1, b1, w2, b2):
    return jnp.maximum(x @ w1 + b1, 0.0) @ w2 + b2


if __name__ == "__main__":
    key = jax.random.PRNGKey(0)

    # Case 1: the module's nominal small shapes.
    batch, seq, dim_embed, dim_pffn = 2, 8, 32, 64
    kx, kp, key = jax.random.split(key, 3)
    x = jax.random.normal(kx, (batch, seq, dim_embed), jnp.float32)
    w1, b1, w2, b2 = _init_params(kp, dim_embed, dim_pffn)

    out = positionwise_feed_forward(x, w1, b1, w2, b2)
    out = jax.block_until_ready(out)
    ref = _reference(x, w1, b1, w2, b2)
    assert out.shape == (batch, seq, dim_embed)
    assert jnp.allclose(out, ref, atol=1e-5, rtol=1e-5)

    # Case 2: row count not a multiple of the tile (exercises the padding path).
    batch2, seq2, dim_embed2, dim_pffn2 = 2, 7, 32, 96
    kx2, kp2 = jax.random.split(key)
    x2 = jax.random.normal(kx2, (batch2, seq2, dim_embed2), jnp.float32)
    p2 = _init_params(kp2, dim_embed2, dim_pffn2)

    out2 = positionwise_feed_forward(x2, *p2)
    out2 = jax.block_until_ready(out2)
    ref2 = _reference(x2, *p2)
    assert out2.shape == (batch2, seq2, dim_embed2)
    assert jnp.allclose(out2, ref2, atol=1e-5, rtol=1e-5)

    print("KERNEL_OK")
</pallas_src>

<mosaic_0001>
module attributes {stable_mosaic.version = 11 : i64} {
  func.func @_ffn_kernel(%arg0: i32, %arg1: i32, %arg2: memref<16x32xf32, #tpu.memory_space<vmem>>, %arg3: memref<32x64xf32, #tpu.memory_space<vmem>>, %arg4: memref<1x64xf32, #tpu.memory_space<vmem>>, %arg5: memref<64x32xf32, #tpu.memory_space<vmem>>, %arg6: memref<1x32xf32, #tpu.memory_space<vmem>>, %arg7: memref<16x32xf32, #tpu.memory_space<vmem>>, %arg8: memref<16x32xf32, #tpu.memory_space<vmem>>) attributes {dimension_semantics = [#tpu.dimension_semantics<parallel>, #tpu.dimension_semantics<arbitrary>], iteration_bounds = array<i64: 1, 1>, scalar_prefetch = 0 : i64, scratch_operands = 1 : i64, tpu.core_type = #tpu.core_type<tc>, window_params = [{transform_indices = @transform_0, window_bounds = array<i64: 16, 32>}, {transform_indices = @transform_1, window_bounds = array<i64: 32, 64>}, {transform_indices = @transform_2, window_bounds = array<i64: 1, 64>}, {transform_indices = @transform_3, window_bounds = array<i64: 64, 32>}, {pipeline_mode = #tpu.pipeline_mode<synchronous>, transform_indices = @transform_4, window_bounds = array<i64: 1, 32>}, {transform_indices = @transform_5, window_bounds = array<i64: 16, 32>}]} {
    %c0_i32 = arith.constant 0 : i32
    %0 = arith.cmpi eq, %arg1, %c0_i32 : i32
    %1 = arith.extui %0 : i1 to i32
    %c0_i32_0 = arith.constant 0 : i32
    %2 = arith.cmpi ne, %1, %c0_i32_0 : i32
    scf.if %2 {
      %cst_16 = arith.constant 0.000000e+00 : f32
      %19 = vector.broadcast %cst_16 : f32 to vector<16x32xf32>
      %c0_17 = arith.constant 0 : index
      %c0_18 = arith.constant 0 : index
      %20 = vector.load %arg8[%c0_17, %c0_18] : memref<16x32xf32, #tpu.memory_space<vmem>>, vector<16x32xf32>
      tpu.vector_store %arg8[%c0_17, %c0_18], %19 {strides = array<i32>} : memref<16x32xf32, #tpu.memory_space<vmem>>, vector<16x32xf32>,
    } else {
    }
    %c0 = arith.constant 0 : index
    %c0_1 = arith.constant 0 : index
    %3 = vector.load %arg2[%c0, %c0_1] : memref<16x32xf32, #tpu.memory_space<vmem>>, vector<16x32xf32>
    %c0_2 = arith.constant 0 : index
    %c0_3 = arith.constant 0 : index
    %4 = vector.load %arg3[%c0_2, %c0_3] : memref<32x64xf32, #tpu.memory_space<vmem>>, vector<32x64xf32>
    %cst = arith.constant dense<0.000000e+00> : vector<16x64xf32>
    %5 = tpu.matmul %3, %4, %cst {dimension_numbers = #tpu.dot_dimension_numbers<[1], [0], [0], [1], [0, 0, 1, 1], [], []>} : vector<16x32xf32>, vector<32x64xf32>, vector<16x64xf32> -> vector<16x64xf32>
    %c0_4 = arith.constant 0 : index
    %c0_5 = arith.constant 0 : index
    %6 = vector.load %arg4[%c0_4, %c0_5] : memref<1x64xf32, #tpu.memory_space<vmem>>, vector<1x64xf32>
    %7 = vector.broadcast %6 : vector<1x64xf32> to vector<16x64xf32>
    %8 = arith.addf %5, %7 : vector<16x64xf32>
    %cst_6 = arith.constant 0.000000e+00 : f32
    %9 = vector.broadcast %cst_6 : f32 to vector<16x64xf32>
    %10 = arith.maximumf %8, %9 : vector<16x64xf32>
    %c0_7 = arith.constant 0 : index
    %c0_8 = arith.constant 0 : index
    %11 = vector.load %arg8[%c0_7, %c0_8] : memref<16x32xf32, #tpu.memory_space<vmem>>, vector<16x32xf32>
    %c0_9 = arith.constant 0 : index
    %c0_10 = arith.constant 0 : index
    %12 = vector.load %arg5[%c0_9, %c0_10] : memref<64x32xf32, #tpu.memory_space<vmem>>, vector<64x32xf32>
    %cst_11 = arith.constant dense<0.000000e+00> : vector<16x32xf32>
    %13 = tpu.matmul %10, %12, %cst_11 {dimension_numbers = #tpu.dot_dimension_numbers<[1], [0], [0], [1], [0, 0, 1, 1], [], []>} : vector<16x64xf32>, vector<64x32xf32>, vector<16x32xf32> -> vector<16x32xf32>
    %14 = arith.addf %11, %13 : vector<16x32xf32>
    %c0_12 = arith.constant 0 : index
    %c0_13 = arith.constant 0 : index
    %15 = vector.load %arg8[%c0_12, %c0_13] : memref<16x32xf32, #tpu.memory_space<vmem>>, vector<16x32xf32>
    tpu.vector_store %arg8[%c0_12, %c0_13], %14 {strides = array<i32>} : memref<16x32xf32, #tpu.memory_space<vmem>>, vector<16x32xf32>,
    %c0_i32_14 = arith.constant 0 : i32
    %16 = arith.cmpi eq, %arg1, %c0_i32_14 : i32
    %17 = arith.extui %16 : i1 to i32
    %c0_i32_15 = arith.constant 0 : i32
    %18 = arith.cmpi ne, %17, %c0_i32_15 : i32
    scf.if %18 {
      %c0_16 = arith.constant 0 : index
      %c0_17 = arith.constant 0 : index
      %19 = vector.load %arg8[%c0_16, %c0_17] : memref<16x32xf32, #tpu.memory_space<vmem>>, vector<16x32xf32>
      %c0_18 = arith.constant 0 : index
      %c0_19 = arith.constant 0 : index
      %20 = vector.load %arg6[%c0_18, %c0_19] : memref<1x32xf32, #tpu.memory_space<vmem>>, vector<1x32xf32>
      %21 = vector.broadcast %20 : vector<1x32xf32> to vector<16x32xf32>
      %22 = arith.addf %19, %21 : vector<16x32xf32>
      %c0_20 = arith.constant 0 : index
      %c0_21 = arith.constant 0 : index
      %23 = vector.load %arg7[%c0_20, %c0_21] : memref<16x32xf32, #tpu.memory_space<vmem>>, vector<16x32xf32>
      tpu.vector_store %arg7[%c0_20, %c0_21], %22 {strides = array<i32>} : memref<16x32xf32, #tpu.memory_space<vmem>>, vector<16x32xf32>,
    } else {
    }
    return
  }
  func.func @transform_0(%arg0: i32, %arg1: i32) -> (i32, i32) {
    %c0_i32 = arith.constant 0 : i32
    %c0_i32_0 = arith.constant 0 : i32
    return %arg0, %c0_i32 : i32, i32
  }
  func.func @transform_1(%arg0: i32, %arg1: i32) -> (i32, i32) {
    %c0_i32 = arith.constant 0 : i32
    %c0_i32_0 = arith.constant 0 : i32
    return %c0_i32, %arg1 : i32, i32
  }
  func.func @transform_2(%arg0: i32, %arg1: i32) -> (i32, i32) {
    %c0_i32 = arith.constant 0 : i32
    %c0_i32_0 = arith.constant 0 : i32
    return %c0_i32, %arg1 : i32, i32
  }
  func.func @transform_3(%arg0: i32, %arg1: i32) -> (i32, i32) {
    %c0_i32 = arith.constant 0 : i32
    %c0_i32_0 = arith.constant 0 : i32
    return %arg1, %c0_i32 : i32, i32
  }
  func.func @transform_4(%arg0: i32, %arg1: i32) -> (i32, i32) {
    %c0_i32 = arith.constant 0 : i32
    %c0_i32_0 = arith.constant 0 : i32
    %c0_i32_1 = arith.constant 0 : i32
    return %c0_i32, %c0_i32_0 : i32, i32
  }
  func.func @transform_5(%arg0: i32, %arg1: i32) -> (i32, i32) {
    %c0_i32 = arith.constant 0 : i32
    %c0_i32_0 = arith.constant 0 : i32
    return %arg0, %c0_i32 : i32, i32
  }
}

</mosaic_0001>

<llo_original>
// kernel: tpu_custom_call.1
$region0: #{tpu_custom_call.1}
  #allocation0 [shape = 'u32[]', space=smem, size = 0x4, offset = 0x4, fixed_abs, tag = 'smem constant byte address 0x4 - core index']
  #allocation1 [shape = 'u32[144,128]{1,0:T(1,128)}', space=vmem, size = 0x12000, scoped, tag = 'internal scratch']
  #allocation2 [shape = 'f32[16,32]{1,0:T(8,128)}', space=vmem, size = 0x2000, scoped, tag = 'scratch operand']
  %s0 = inlined_call_operand.hbm [shape: f32[16,32], index: 0, kind: input, shape index: {}]
  %s1 = inlined_call_operand.hbm [shape: f32[32,64], index: 1, kind: input, shape index: {}]
  %s2 = inlined_call_operand.hbm [shape: f32[1,64], index: 2, kind: input, shape index: {}]
  %s3 = inlined_call_operand.hbm [shape: f32[64,32], index: 3, kind: input, shape index: {}]
  %s4 = inlined_call_operand.hbm [shape: f32[1,32], index: 4, kind: input, shape index: {}]
  %s5 = inlined_call_operand.hbm [shape: f32[16,32], index: 5, kind: output, shape index: {}]
  %s6 = sld [smem:[#allocation0]]
  $region58: #{tpu_custom_call.1} parent=0
    _
  %s8 = ssub.s32 1, %s6
  %s9 = scalar_select 0, %s8, %s6
  $region1: #{tpu_custom_call.1} parent=0
    #allocation3 [shape = 'u8[8192]{0}', space=vmem, size = 0x2000, scoped, tag = 'input window, operand 0, single buffered']
    #allocation4 [shape = 's32[1]{0}', space=sflag, size = 0x4, scoped, tag = 'scoped memory for tpu_custom_call.1']
    #allocation5 [shape = 's32[1]{0}', space=sflag, size = 0x4, scoped, tag = 'scoped memory for tpu_custom_call.1']
    #allocation6 [shape = 'u8[16384]{0}', space=vmem, size = 0x4000, scoped, tag = 'input window, operand 1, single buffered']
    #allocation7 [shape = 's32[1]{0}', space=sflag, size = 0x4, scoped, tag = 'scoped memory for tpu_custom_call.1']
    #allocation8 [shape = 'u8[512]{0}', space=vmem, size = 0x400, scoped, tag = 'input window, operand 2, single buffered']
    #allocation9 [shape = 'u8[32768]{0}', space=vmem, size = 0x8000, scoped, tag = 'input window, operand 3, single buffered']
    #allocation10 [shape = 's32[1]{0}', space=sflag, size = 0x4, scoped, tag = 'scoped memory for tpu_custom_call.1']
    #allocation11 [shape = 'u8[512]{0}', space=vmem, size = 0x400, scoped, tag = 'input window, operand 4, single buffered']
    #allocation12 [shape = 'u8[8192]{0}', space=vmem, size = 0x2000, scoped, tag = 'output window, operand 0, single buffered']
    %10 = vsyncpa [#allocation4], 0
    %11 = vsyncpa [#allocation7], 0
    %12 = vsyncpa [#allocation10], 0
    %13 = vsyncpa [#allocation5], 0
    // Predicated region
    $region2: #{tpu_custom_call.1} parent=1 // pred_check
      _
    $region3: #{tpu_custom_call.1} parent=1 // pred_check_branch
      %15 = sbr.rel (0) target = $region5
    $region4: #{tpu_custom_call.1} parent=1 // pred_region
      %s17 = ssub.s32 256, 256
      %18 = vsyncadd [#allocation4], %s17
      %s19 = sshll.u32 [#allocation3], 4
      %s20 = int_to_ptr.vmem [resolvable:$true] %s19
      %25 = dma.hbm_to_vmem [thread:$0]  %s0, 256, %s20, [#allocation4], 128, 128, 8
    $region5: #{tpu_custom_call.1} parent=1 // pred_fallthru
      _
    // Predicated region
    $region6: #{tpu_custom_call.1} parent=1 // pred_check
      _
    $region7: #{tpu_custom_call.1} parent=1 // pred_check_branch
      %27 = sbr.rel (0) target = $region9
    $region8: #{tpu_custom_call.1} parent=1 // pred_region
      %s29 = ssub.s32 512, 512
      %30 = vsyncadd [#allocation7], %s29
      %s31 = sshll.u32 [#allocation6], 4
      %s32 = int_to_ptr.vmem [resolvable:$true] %s31
      %37 = dma.hbm_to_vmem [thread:$0]  %s1, 512, %s32, [#allocation7], 128, 128, 8
    $region9: #{tpu_custom_call.1} parent=1 // pred_fallthru
      _
    // Predicated region
    $region10: #{tpu_custom_call.1} parent=1 // pred_check
      _
    $region11: #{tpu_custom_call.1} parent=1 // pred_check_branch
      %39 = sbr.rel (0) target = $region13
    $region12: #{tpu_custom_call.1} parent=1 // pred_region
      %s41 = ssub.s32 16, 16
      %42 = vsyncadd [#allocation7], %s41
      %s44 = sshll.u32 [#allocation8], 4
      %s45 = int_to_ptr.vmem [resolvable:$true] %s44
      %47 = dma.hbm_to_vmem [thread:$0]  %s2, 16, %s45, [#allocation7]
    $region13: #{tpu_custom_call.1} parent=1 // pred_fallthru
      _
    // Predicated region
    $region14: #{tpu_custom_call.1} parent=1 // pred_check
      _
    $region15: #{tpu_custom_call.1} parent=1 // pred_check_branch
      %49 = sbr.rel (0) target = $region17
    $region16: #{tpu_custom_call.1} parent=1 // pred_region
      %s51 = ssub.s32 1024, 1024
      %52 = vsyncadd [#allocation10], %s51
      %s53 = sshll.u32 [#allocation9], 4
      %s54 = int_to_ptr.vmem [resolvable:$true] %s53
      %59 = dma.hbm_to_vmem [thread:$0]  %s3, 1024, %s54, [#allocation10], 128, 128, 8
    $region17: #{tpu_custom_call.1} parent=1 // pred_fallthru
      _
    // Predicated region
    $region18: #{tpu_custom_call.1} parent=1 // pred_check
      _
    $region19: #{tpu_custom_call.1} parent=1 // pred_check_branch
      %61 = sbr.rel (0) target = $region21
    $region20: #{tpu_custom_call.1} parent=1 // pred_region
      %s63 = ssub.s32 16, 16
      %64 = vsyncadd [#allocation10], %s63
      %s66 = sshll.u32 [#allocation11], 4
      %s67 = int_to_ptr.vmem [resolvable:$true] %s66
      %69 = dma.hbm_to_vmem [thread:$0]  %s4, 16, %s67, [#allocation10]
    $region21: #{tpu_custom_call.1} parent=1 // pred_fallthru
      _
    // Predicated region
    $region22: #{tpu_custom_call.1} parent=1 // pred_check
      _
    $region23: #{tpu_custom_call.1} parent=1 // pred_check_branch
      %71 = sbr.rel (0) target = $region25
    $region24: #{tpu_custom_call.1} parent=1 // pred_region
      %72 = dma.done [#allocation4], 256
    $region25: #{tpu_custom_call.1} parent=1 // pred_fallthru
      _
    // Predicated region
    $region26: #{tpu_custom_call.1} parent=1 // pred_check
      _
    $region27: #{tpu_custom_call.1} parent=1 // pred_check_branch
      %74 = sbr.rel (0) target = $region29
    $region28: #{tpu_custom_call.1} parent=1 // pred_region
      %75 = dma.done [#allocation7], 512
    $region29: #{tpu_custom_call.1} parent=1 // pred_fallthru
      _
    // Predicated region
    $region30: #{tpu_custom_call.1} parent=1 // pred_check
      _
    $region31: #{tpu_custom_call.1} parent=1 // pred_check_branch
      %77 = sbr.rel (0) target = $region33
    $region32: #{tpu_custom_call.1} parent=1 // pred_region
      %78 = dma.done [#allocation7], 16
    $region33: #{tpu_custom_call.1} parent=1 // pred_fallthru
      _
    // Predicated region
    $region34: #{tpu_custom_call.1} parent=1 // pred_check
      _
    $region35: #{tpu_custom_call.1} parent=1 // pred_check_branch
      %80 = sbr.rel (0) target = $region37
    $region36: #{tpu_custom_call.1} parent=1 // pred_region
      %81 = dma.done [#allocation10], 1024
    $region37: #{tpu_custom_call.1} parent=1 // pred_fallthru
      _
    // Predicated region
    $region38: #{tpu_custom_call.1} parent=1 // pred_check
      _
    $region39: #{tpu_custom_call.1} parent=1 // pred_check_branch
      %83 = sbr.rel (0) target = $region41
    $region40: #{tpu_custom_call.1} parent=1 // pred_region
      %84 = dma.done [#allocation10], 16
    $region41: #{tpu_custom_call.1} parent=1 // pred_fallthru
      _
    %p85 = scmp.eq.s32.totalorder 0, 0
    // Predicated region
    $region42: #{tpu_custom_call.1} parent=1 // pred_check
      %p86 = pneg %p85
    $region43: #{tpu_custom_call.1} parent=1 // pred_check_branch
      %88 = sbr.rel (%p86) target = $region45
    $region44: #{tpu_custom_call.1} parent=1 // pred_region
      %vm89 = vcmask 261120
      %90 = vst.msk [vmem:[#allocation2] sm:$0xff] %vm89, 0.0
      %91 = vst.msk [vmem:[#allocation2 + $0x8] sm:$0xff] %vm89, 0.0
    $region45: #{tpu_custom_call.1} parent=1 // pred_fallthru
      _
    %v92 = vld [vmem:[#allocation3] sm:$0xff]
    %v93 = vld [vmem:[#allocation3 + $0x8] sm:$0xff]
    %v94 = vld [vmem:[#allocation6] sm:$0xff]
    %v95 = vld [vmem:[#allocation6 + $0x8] sm:$0xff]
    %v96 = vld [vmem:[#allocation6 + $0x10] sm:$0xff]
    %v97 = vld [vmem:[#allocation6 + $0x18] sm:$0xff]
    %v98 = vld [vmem:[#allocation8] sm:$0x1]
    %v100 = vlaneseq
    %v101 = vshrl.u32 %v100, 7
    %v102 = vsub.s32 0, %v101
    %v103 = vrot.slane %v98, %v102
    %vm105 = vcmask 261120
    %v107 = vsel %vm105, %v92, 0
    %v110 = vsel %vm105, %v93, 0
    %112 = vmatprep.subr.mxu0 0.0
    %113 = vmatpush1.msra.mxu0 %v94
    %114 = vmatprep.subr.mxu0 0.0
    %115 = vmatpush1.msra.mxu0 %v95
    %116 = vmatprep.subr.mxu0 0.0
    %117 = vmatpush1.msra.mxu0 %v96
    %118 = vmatprep.subr.mxu0 0.0
    %119 = vmatpush1.msra.mxu0 %v97
    %120 = vmatprep.subr.mxu0 0.0
    %121 = vmatpush1.msra.mxu0 0.0
    %122 = vmatprep.subr.mxu0 0.0
    %123 = vmatpush1.msra.mxu0 0.0
    %124 = vmatprep.subr.mxu0 0.0
    %125 = vmatpush1.msra.mxu0 0.0
    %126 = vmatprep.subr.mxu0 0.0
    %127 = vmatpush1.msra.mxu0 0.0
    %128 = vmatprep.subr.mxu0 0.0
    %129 = vmatpush1.msra.mxu0 0.0
    %130 = vmatprep.subr.mxu0 0.0
    %131 = vmatpush1.msra.mxu0 0.0
    %132 = vmatprep.subr.mxu0 0.0
    %133 = vmatpush1.msra.mxu0 0.0
    %134 = vmatprep.subr.mxu0 0.0
    %135 = vmatpush1.msra.mxu0 0.0
    %136 = vmatprep.subr.mxu0 0.0
    %137 = vmatpush1.msra.mxu0 0.0
    %138 = vmatprep.subr.mxu0 0.0
    %139 = vmatpush1.msra.mxu0 0.0
    %140 = vmatprep.subr.mxu0 0.0
    %141 = vmatpush1.msra.mxu0 0.0
    %142 = vmatprep.subr.mxu0 0.0
    %143 = vmatpush1.msra.mxu0 0.0
    %144 = vmatprep.subr.mxu0 0.0
    %145 = vmatpush1.msra.mxu0 0.0
    %146 = vmatprep.subr.mxu0 0.0
    %147 = vmatpush1.msra.mxu0 0.0
    %148 = vmatprep.subr.mxu0 0.0
    %149 = vmatpush1.msra.mxu0 0.0
    %150 = vmatprep.subr.mxu0 0.0
    %151 = vmatpush1.msra.mxu0 0.0
    %152 = vmatprep.subr.mxu0 0.0
    %153 = vmatpush1.msra.mxu0 0.0
    %154 = vmatprep.subr.mxu0 0.0
    %155 = vmatpush1.msra.mxu0 0.0
    %156 = vmatprep.subr.mxu0 0.0
    %157 = vmatpush1.msra.mxu0 0.0
    %158 = vmatprep.subr.mxu0 0.0
    %159 = vmatpush1.msra.mxu0 0.0
    %160 = vmatprep.subr.mxu0 0.0
    %161 = vmatpush1.msra.mxu0 0.0
    %162 = vmatprep.subr.mxu0 0.0
    %163 = vmatpush1.msra.mxu0 0.0
    %164 = vmatprep.subr.mxu0 0.0
    %165 = vmatpush1.msra.mxu0 0.0
    %166 = vmatprep.subr.mxu0 0.0
    %167 = vmatpush1.msra.mxu0 0.0
    %168 = vmatprep.subr.mxu0 0.0
    %169 = vmatpush1.msra.mxu0 0.0
    %170 = vmatprep.subr.mxu0 0.0
    %171 = vmatpush1.msra.mxu0 0.0
    %172 = vmatprep.subr.mxu0 0.0
    %173 = vmatpush1.msra.mxu0 0.0
    %174 = vmatprep.subr.mxu0 0.0
    %175 = vmatpush1.msra.mxu0 0.0
    %176 = vmatprep.mubr.f32.mxu0 0.0
    %177 = vmatmul.mubr.f32.gmra.mrb[0].mxu0 %v107
    %v178 = vpop.f32.mrb[0].mxu0
    %v179 = vadd.f32 %v103, %v178
    %v180 = vpop.f32.mrb[0].mxu0
    %181 = vmatprep.mubr.f32.mxu0 0.0
    %182 = vmatmul.mubr.f32.gmra.mrb[0].mxu0 %v110
    %v183 = vpop.f32.mrb[0].mxu0
    %v184 = vadd.f32 %v103, %v183
    %v185 = vpop.f32.mrb[0].mxu0
    %186 = vdwg.mxu0
    %v187 = vmax.f32 %v179, 0.0
    %v188 = vmax.f32 %v184, 0.0
    %v189 = vld [vmem:[#allocation2] sm:$0xff]
    %v190 = vld [vmem:[#allocation2 + $0x8] sm:$0xff]
    %v191 = vld [vmem:[#allocation9] sm:$0xff]
    %v192 = vld [vmem:[#allocation9 + $0x8] sm:$0xff]
    %v193 = vld [vmem:[#allocation9 + $0x10] sm:$0xff]
    %v194 = vld [vmem:[#allocation9 + $0x18] sm:$0xff]
    %v195 = vld [vmem:[#allocation9 + $0x20] sm:$0xff]
    %v196 = vld [vmem:[#allocation9 + $0x28] sm:$0xff]
    %v197 = vld [vmem:[#allocation9 + $0x30] sm:$0xff]
    %v198 = vld [vmem:[#allocation9 + $0x38] sm:$0xff]
    %vm199 = vcmask 523264
    %v201 = vsel %vm199, %v187, 0
    %v204 = vsel %vm199, %v188, 0
    %206 = vmatprep.subr.mxu0 0.0
    %207 = vmatpush1.msra.mxu0 %v191
    %208 = vmatprep.subr.mxu0 0.0
    %209 = vmatpush1.msra.mxu0 %v192
    %210 = vmatprep.subr.mxu0 0.0
    %211 = vmatpush1.msra.mxu0 %v193
    %212 = vmatprep.subr.mxu0 0.0
    %213 = vmatpush1.msra.mxu0 %v194
    %214 = vmatprep.subr.mxu0 0.0
    %215 = vmatpush1.msra.mxu0 %v195
    %216 = vmatprep.subr.mxu0 0.0
    %217 = vmatpush1.msra.mxu0 %v196
    %218 = vmatprep.subr.mxu0 0.0
    %219 = vmatpush1.msra.mxu0 %v197
    %220 = vmatprep.subr.mxu0 0.0
    %221 = vmatpush1.msra.mxu0 %v198
    %222 = vmatprep.subr.mxu0 0.0
    %223 = vmatpush1.msra.mxu0 0.0
    %224 = vmatprep.subr.mxu0 0.0
    %225 = vmatpush1.msra.mxu0 0.0
    %226 = vmatprep.subr.mxu0 0.0
    %227 = vmatpush1.msra.mxu0 0.0
    %228 = vmatprep.subr.mxu0 0.0
    %229 = vmatpush1.msra.mxu0 0.0
    %230 = vmatprep.subr.mxu0 0.0
    %231 = vmatpush1.msra.mxu0 0.0
    %232 = vmatprep.subr.mxu0 0.0
    %233 = vmatpush1.msra.mxu0 0.0
    %234 = vmatprep.subr.mxu0 0.0
    %235 = vmatpush1.msra.mxu0 0.0
    %236 = vmatprep.subr.mxu0 0.0
    %237 = vmatpush1.msra.mxu0 0.0
    %238 = vmatprep.subr.mxu0 0.0
    %239 = vmatpush1.msra.mxu0 0.0
    %240 = vmatprep.subr.mxu0 0.0
    %241 = vmatpush1.msra.mxu0 0.0
    %242 = vmatprep.subr.mxu0 0.0
    %243 = vmatpush1.msra.mxu0 0.0
    %244 = vmatprep.subr.mxu0 0.0
    %245 = vmatpush1.msra.mxu0 0.0
    %246 = vmatprep.subr.mxu0 0.0
    %247 = vmatpush1.msra.mxu0 0.0
    %248 = vmatprep.subr.mxu0 0.0
    %249 = vmatpush1.msra.mxu0 0.0
    %250 = vmatprep.subr.mxu0 0.0
    %251 = vmatpush1.msra.mxu0 0.0
    %252 = vmatprep.subr.mxu0 0.0
    %253 = vmatpush1.msra.mxu0 0.0
    %254 = vmatprep.subr.mxu0 0.0
    %255 = vmatpush1.msra.mxu0 0.0
    %256 = vmatprep.subr.mxu0 0.0
    %257 = vmatpush1.msra.mxu0 0.0
    %258 = vmatprep.subr.mxu0 0.0
    %259 = vmatpush1.msra.mxu0 0.0
    %260 = vmatprep.subr.mxu0 0.0
    %261 = vmatpush1.msra.mxu0 0.0
    %262 = vmatprep.subr.mxu0 0.0
    %263 = vmatpush1.msra.mxu0 0.0
    %264 = vmatprep.subr.mxu0 0.0
    %265 = vmatpush1.msra.mxu0 0.0
    %266 = vmatprep.subr.mxu0 0.0
    %267 = vmatpush1.msra.mxu0 0.0
    %268 = vmatprep.subr.mxu0 0.0
    %269 = vmatpush1.msra.mxu0 0.0
    %270 = vmatprep.mubr.f32.mxu0 0.0
    %271 = vmatmul.mubr.f32.gmra.mrb[0].mxu0 %v201
    %v272 = vpop.f32.mrb[0].mxu0
    %v273 = vadd.f32 0.0, %v272
    %v274 = vpop.f32.mrb[0].mxu0
    %275 = vmatprep.mubr.f32.mxu0 0.0
    %276 = vmatmul.mubr.f32.gmra.mrb[0].mxu0 %v204
    %v277 = vpop.f32.mrb[0].mxu0
    %v278 = vadd.f32 0.0, %v277
    %v279 = vpop.f32.mrb[0].mxu0
    %280 = vdwg.mxu0
    %v281 = vadd.f32 %v189, %v273
    %v282 = vadd.f32 %v190, %v278
    %283 = vst.msk [vmem:[#allocation2] sm:$0xff] %vm105, %v281
    %284 = vst.msk [vmem:[#allocation2 + $0x8] sm:$0xff] %vm105, %v282
    // Predicated region
    $region46: #{tpu_custom_call.1} parent=1 // pred_check
      %p285 = pneg %p85
    $region47: #{tpu_custom_call.1} parent=1 // pred_check_branch
      %287 = sbr.rel (%p285) target = $region49
    $region48: #{tpu_custom_call.1} parent=1 // pred_region
      %v288 = vld [vmem:[#allocation2] sm:$0xff]
      %v289 = vld [vmem:[#allocation2 + $0x8] sm:$0xff]
      %v290 = vld [vmem:[#allocation11] sm:$0x1]
      %v292 = vlaneseq
      %v293 = vshrl.u32 %v292, 7
      %v294 = vsub.s32 0, %v293
      %v295 = vrot.slane %v290, %v294
      %v297 = vadd.f32 %v288, %v295
      %v298 = vadd.f32 %v289, %v295
      %299 = vst.msk [vmem:[#allocation12] sm:$0xff] %vm105, %v297
      %300 = vst.msk [vmem:[#allocation12 + $0x8] sm:$0xff] %vm105, %v298
    $region49: #{tpu_custom_call.1} parent=1 // pred_fallthru
      _
    // Predicated region
    $region50: #{tpu_custom_call.1} parent=1 // pred_check
      _
    $region51: #{tpu_custom_call.1} parent=1 // pred_check_branch
      %302 = sbr.rel (0) target = $region53
    $region52: #{tpu_custom_call.1} parent=1 // pred_region
      %s304 = ssub.s32 256, 256
      %305 = vsyncadd [#allocation5], %s304
      %s306 = sshll.u32 [#allocation12], 4
      %s307 = int_to_ptr.vmem [resolvable:$true] %s306
      %312 = dma.vmem_to_hbm [thread:$0]  %s307, 256, %s5, [#allocation5], 128, 128, 8
    $region53: #{tpu_custom_call.1} parent=1 // pred_fallthru
      _
    // Predicated region
    $region54: #{tpu_custom_call.1} parent=1 // pred_check
      _
    $region55: #{tpu_custom_call.1} parent=1 // pred_check_branch
      %314 = sbr.rel (0) target = $region57
    $region56: #{tpu_custom_call.1} parent=1 // pred_region
      %315 = dma.done [#allocation5], 256
    $region57: #{tpu_custom_call.1} parent=1 // pred_fallthru
      _
    %316 = vsyncpa [#allocation4], 1
    %317 = vsyncpa [#allocation7], 1
    %318 = vsyncpa [#allocation10], 1
    %319 = vsyncpa [#allocation5], 1

</llo_original>
